<compile_context>
chip_gen: v6e
topology: v6e:2x2x1
jax: 0.10.0
libtpu: 0.0.40
codegen_flags: <defaults>
</compile_context>

<pallas_src>
import functools

import jax
import jax.numpy as jnp
from jax.experimental import pallas as pl
from jax.experimental.pallas import tpu as pltpu


def _round_up(a, m):
    return (a + m - 1) // m * m


def rank_kernel(x_ref, w1_ref, b1_ref, w2_ref, b2_ref, o_ref):
    # x_ref: [TBf, 2*F*S] -- F batch rows folded per VMEM row, lane-dense.
    x = x_ref[...].astype(jnp.float32)
    # Fused layer 1: block-diagonal weight applies W1.T to every (row, pair)
    # segment in a single MXU pass -> [TBf, 2*F*H].
    a = jnp.maximum(
        jnp.dot(x, w1_ref[...], preferred_element_type=jnp.float32)
        + b1_ref[...],
        0.0,
    )
    # Fused layer 2: the (a1 - a0) difference is folded into the weight sign,
    # block-diagonal over the folded rows -> [TBf, F*O].
    logits = (
        jnp.dot(a, w2_ref[...], preferred_element_type=jnp.float32)
        + b2_ref[...]
    )
    o_ref[...] = jax.nn.sigmoid(logits).astype(o_ref.dtype)


@functools.partial(jax.jit, static_argnames=("block_rows",))
def rank_model_forward(x, w1, b1, w2, b2, *, block_rows=16384):
    """RankModel forward.  x: [B, 2, S]; returns sigmoid logits [B, 2] (f32)."""
    B, two, S = x.shape
    assert two == 2
    H = w1.shape[0]  # 40
    O = w2.shape[0]  # 2

    # ---- pair-fold factor -------------------------------------------------
    F = 2 if (B >= 2 and B % 2 == 0) else 1
    Bf = B // F
    K1 = 2 * F * S   # layer-1 contraction width (128 for F=2, S=32)
    N1 = 2 * F * H   # layer-1 output width
    NO = F * O       # output lanes per folded row

    # ---- fused parameters (tiny; pure param reshuffle, built once/call) ----
    f32 = jnp.float32
    w1_t = w1.T.astype(f32)                               # [S, H]
    w2_t = w2.T.astype(f32)                               # [H, O]
    w2_cat = jnp.concatenate([-w2_t, w2_t], axis=0)       # [2H, O]  (a1 - a0)
    w1_fold = jnp.kron(jnp.eye(2 * F, dtype=f32), w1_t)   # [K1, N1] block-diag
    w2_fold = jnp.kron(jnp.eye(F, dtype=f32), w2_cat)     # [N1, NO] block-diag
    b1_fold = jnp.tile(b1.astype(f32), 2 * F).reshape(1, N1)
    b2_fold = jnp.tile(b2.astype(f32), F).reshape(1, NO)

    # ---- x as a folded [Bf, K1] view (contiguous reshape; no copy/cast) ----
    xf = x.reshape(Bf, K1)

    # ---- batch tiling -------------------------------------------------------
    lanes_x = _round_up(K1, 128)
    lanes_o = _round_up(NO, 128)
    weight_bytes = 4 * (K1 * N1 + N1 + N1 * NO + NO)

    def _vmem_est(rows):   # 2 pipeline buffers each for the x and out blocks
        return 2 * 4 * rows * (lanes_x + lanes_o) + 2 * weight_bytes

    VMEM_BUDGET = 36 << 20   # conservative for v7x (64 MiB/TC physical VMEM)
    max_rows = max(block_rows // F, 8)
    while _vmem_est(max_rows) > VMEM_BUDGET and max_rows > 8:
        max_rows = max(_round_up(max_rows // 2, 8), 8)

    if Bf <= max_rows:
        if Bf >= 2048:
            # Two roughly even steps so both v7x TensorCores get work.
            TBf = _round_up((Bf + 1) // 2, 8)
        else:
            TBf = Bf                      # exact single block, no masking
    else:
        TBf = max_rows                    # big tiles; ragged last block masked

    grid = (pl.cdiv(Bf, TBf),)            # no jnp.pad / out[:B] copies

    x_spec = pl.BlockSpec((TBf, K1), lambda i: (i, 0))
    w1_spec = pl.BlockSpec((K1, N1), lambda i: (0, 0))    # VMEM-resident
    b1_spec = pl.BlockSpec((1, N1), lambda i: (0, 0))
    w2_spec = pl.BlockSpec((N1, NO), lambda i: (0, 0))
    b2_spec = pl.BlockSpec((1, NO), lambda i: (0, 0))
    out_spec = pl.BlockSpec((TBf, NO), lambda i: (i, 0))

    vmem_limit = int(min(max(_vmem_est(TBf) + (6 << 20), 32 << 20), 48 << 20))

    n_rows = grid[0] * TBf
    cost = pl.CostEstimate(
        # NOTE: deliberately counts the zero blocks of the block-diagonal
        # fused weights -- this is the MXU work actually issued (it lives in
        # lanes the MXU would pad anyway), not the model's logical FLOPs.
        flops=2 * n_rows * K1 * N1 + 2 * n_rows * N1 * NO + 6 * n_rows * N1,
        transcendentals=n_rows * NO,
        bytes_accessed=(Bf * K1 * x.dtype.itemsize + Bf * NO * 4 + weight_bytes),
    )

    out = pl.pallas_call(
        rank_kernel,
        out_shape=jax.ShapeDtypeStruct((Bf, NO), jnp.float32),
        grid=grid,
        in_specs=[x_spec, w1_spec, b1_spec, w2_spec, b2_spec],
        out_specs=out_spec,
        compiler_params=pltpu.CompilerParams(
            dimension_semantics=("parallel",),
            vmem_limit_bytes=vmem_limit,
        ),
        cost_estimate=cost,
    )(xf, w1_fold, b1_fold, w2_fold, b2_fold)

    # Free (contiguous) view back to [B, 2].
    return out.reshape(B, O)


def init_params(key, seg_length, hidden=40, out=2):
    """Deterministic PyTorch-style uniform(-1/sqrt(fan_in), 1/sqrt(fan_in))."""
    k1, k2, k3, k4 = jax.random.split(key, 4)
    bound1 = 1.0 / jnp.sqrt(seg_length)
    bound2 = 1.0 / jnp.sqrt(hidden)
    w1 = jax.random.uniform(k1, (hidden, seg_length), jnp.float32,
                            -bound1, bound1)
    b1 = jax.random.uniform(k2, (hidden,), jnp.float32, -bound1, bound1)
    w2 = jax.random.uniform(k3, (out, hidden), jnp.float32, -bound2, bound2)
    b2 = jax.random.uniform(k4, (out,), jnp.float32, -bound2, bound2)
    return w1, b1, w2, b2


def reference_forward(x, w1, b1, w2, b2):
    a0 = jax.nn.relu(x[:, 0] @ w1.T + b1)
    a1 = jax.nn.relu(x[:, 1] @ w1.T + b1)
    diff = a1 - a0
    return jax.nn.sigmoid(diff @ w2.T + b2)


if __name__ == "__main__":
    key = jax.random.PRNGKey(0)
    kx, kp = jax.random.split(key)

    seg_length = 32
    w1, b1, w2, b2 = init_params(kp, seg_length)

    # Primary small shape (even batch -> pair-folded, 128-lane x rows).
    B = 8
    x = jax.random.normal(kx, (B, 2, seg_length), jnp.float32)
    out = jax.block_until_ready(rank_model_forward(x, w1, b1, w2, b2))
    ref = reference_forward(x, w1, b1, w2, b2)
    assert out.shape == (B, 2)
    # atol 2e-5: the fused layer-2 accumulation reorders f32 sums slightly.
    assert jnp.allclose(out, ref, atol=2e-5, rtol=1e-5), float(
        jnp.max(jnp.abs(out - ref)))

    # Odd batch -> F=1 fallback path.
    B2 = 5
    x2 = jax.random.normal(jax.random.fold_in(kx, 1), (B2, 2, seg_length),
                           jnp.float32)
    out2 = jax.block_until_ready(rank_model_forward(x2, w1, b1, w2, b2))
    ref2 = reference_forward(x2, w1, b1, w2, b2)
    assert out2.shape == (B2, 2)
    assert jnp.allclose(out2, ref2, atol=2e-5, rtol=1e-5)

    # Multi-step grid with a ragged (masked) last block, no padding copies.
    B3 = 4100
    x3 = jax.random.normal(jax.random.fold_in(kx, 2), (B3, 2, seg_length),
                           jnp.float32)
    out3 = jax.block_until_ready(rank_model_forward(x3, w1, b1, w2, b2))
    ref3 = reference_forward(x3, w1, b1, w2, b2)
    assert out3.shape == (B3, 2)
    assert jnp.allclose(out3, ref3, atol=2e-5, rtol=1e-5)

    print("KERNEL_OK")
</pallas_src>

<mosaic_0001>
module attributes {stable_mosaic.version = 11 : i64} {
  func.func @rank_kernel(%arg0: i32, %arg1: memref<4x128xf32, #tpu.memory_space<vmem>>, %arg2: memref<128x160xf32, #tpu.memory_space<vmem>>, %arg3: memref<1x160xf32, #tpu.memory_space<vmem>>, %arg4: memref<160x4xf32, #tpu.memory_space<vmem>>, %arg5: memref<1x4xf32, #tpu.memory_space<vmem>>, %arg6: memref<4x4xf32, #tpu.memory_space<vmem>>) attributes {dimension_semantics = [#tpu.dimension_semantics<parallel>], iteration_bounds = array<i64: 1>, scalar_prefetch = 0 : i64, scratch_operands = 0 : i64, tpu.core_type = #tpu.core_type<tc>, window_params = [{transform_indices = @transform_0, window_bounds = array<i64: 4, 128>}, {pipeline_mode = #tpu.pipeline_mode<synchronous>, transform_indices = @transform_1, window_bounds = array<i64: 128, 160>}, {pipeline_mode = #tpu.pipeline_mode<synchronous>, transform_indices = @transform_2, window_bounds = array<i64: 1, 160>}, {pipeline_mode = #tpu.pipeline_mode<synchronous>, transform_indices = @transform_3, window_bounds = array<i64: 160, 4>}, {pipeline_mode = #tpu.pipeline_mode<synchronous>, transform_indices = @transform_4, window_bounds = array<i64: 1, 4>}, {transform_indices = @transform_5, window_bounds = array<i64: 4, 4>}]} {
    %c0 = arith.constant 0 : index
    %c0_0 = arith.constant 0 : index
    %0 = vector.load %arg1[%c0, %c0_0] : memref<4x128xf32, #tpu.memory_space<vmem>>, vector<4x128xf32>
    %c0_1 = arith.constant 0 : index
    %c0_2 = arith.constant 0 : index
    %1 = vector.load %arg2[%c0_1, %c0_2] : memref<128x160xf32, #tpu.memory_space<vmem>>, vector<128x160xf32>
    %cst = arith.constant dense<0.000000e+00> : vector<4x160xf32>
    %2 = tpu.matmul %0, %1, %cst {dimension_numbers = #tpu.dot_dimension_numbers<[1], [0], [0], [1], [0, 0, 1, 1], [], []>} : vector<4x128xf32>, vector<128x160xf32>, vector<4x160xf32> -> vector<4x160xf32>
    %c0_3 = arith.constant 0 : index
    %c0_4 = arith.constant 0 : index
    %3 = vector.load %arg3[%c0_3, %c0_4] : memref<1x160xf32, #tpu.memory_space<vmem>>, vector<1x160xf32>
    %4 = vector.broadcast %3 : vector<1x160xf32> to vector<4x160xf32>
    %5 = arith.addf %2, %4 : vector<4x160xf32>
    %cst_5 = arith.constant 0.000000e+00 : f32
    %6 = vector.broadcast %cst_5 : f32 to vector<4x160xf32>
    %7 = arith.maximumf %5, %6 : vector<4x160xf32>
    %c0_6 = arith.constant 0 : index
    %c0_7 = arith.constant 0 : index
    %8 = vector.load %arg4[%c0_6, %c0_7] : memref<160x4xf32, #tpu.memory_space<vmem>>, vector<160x4xf32>
    %cst_8 = arith.constant dense<0.000000e+00> : vector<4x4xf32>
    %9 = tpu.matmul %7, %8, %cst_8 {dimension_numbers = #tpu.dot_dimension_numbers<[1], [0], [0], [1], [0, 0, 1, 1], [], []>} : vector<4x160xf32>, vector<160x4xf32>, vector<4x4xf32> -> vector<4x4xf32>
    %c0_9 = arith.constant 0 : index
    %c0_10 = arith.constant 0 : index
    %10 = vector.load %arg5[%c0_9, %c0_10] : memref<1x4xf32, #tpu.memory_space<vmem>>, vector<1x4xf32>
    %11 = vector.broadcast %10 : vector<1x4xf32> to vector<4x4xf32>
    %12 = arith.addf %9, %11 : vector<4x4xf32>
    %13 = arith.negf %12 : vector<4x4xf32>
    %14 = math.exp %13 : vector<4x4xf32>
    %cst_11 = arith.constant 1.000000e+00 : f32
    %15 = vector.broadcast %cst_11 : f32 to vector<4x4xf32>
    %16 = arith.addf %15, %14 : vector<4x4xf32>
    %17 = arith.divf %15, %16 : vector<4x4xf32>
    %c0_12 = arith.constant 0 : index
    %c0_13 = arith.constant 0 : index
    %18 = vector.load %arg6[%c0_12, %c0_13] : memref<4x4xf32, #tpu.memory_space<vmem>>, vector<4x4xf32>
    tpu.vector_store %arg6[%c0_12, %c0_13], %17 {strides = array<i32>} : memref<4x4xf32, #tpu.memory_space<vmem>>, vector<4x4xf32>,
    return
  }
  func.func @transform_0(%arg0: i32) -> (i32, i32) {
    %c0_i32 = arith.constant 0 : i32
    %c0_i32_0 = arith.constant 0 : i32
    return %arg0, %c0_i32 : i32, i32
  }
  func.func @transform_1(%arg0: i32) -> (i32, i32) {
    %c0_i32 = arith.constant 0 : i32
    %c0_i32_0 = arith.constant 0 : i32
    %c0_i32_1 = arith.constant 0 : i32
    return %c0_i32, %c0_i32_0 : i32, i32
  }
  func.func @transform_2(%arg0: i32) -> (i32, i32) {
    %c0_i32 = arith.constant 0 : i32
    %c0_i32_0 = arith.constant 0 : i32
    %c0_i32_1 = arith.constant 0 : i32
    return %c0_i32, %c0_i32_0 : i32, i32
  }
  func.func @transform_3(%arg0: i32) -> (i32, i32) {
    %c0_i32 = arith.constant 0 : i32
    %c0_i32_0 = arith.constant 0 : i32
    %c0_i32_1 = arith.constant 0 : i32
    return %c0_i32, %c0_i32_0 : i32, i32
  }
  func.func @transform_4(%arg0: i32) -> (i32, i32) {
    %c0_i32 = arith.constant 0 : i32
    %c0_i32_0 = arith.constant 0 : i32
    %c0_i32_1 = arith.constant 0 : i32
    return %c0_i32, %c0_i32_0 : i32, i32
  }
  func.func @transform_5(%arg0: i32) -> (i32, i32) {
    %c0_i32 = arith.constant 0 : i32
    %c0_i32_0 = arith.constant 0 : i32
    return %arg0, %c0_i32 : i32, i32
  }
}

</mosaic_0001>

<llo_original>
// kernel: tile.13
$region0: #{tile.13}
  #allocation0 [shape = 's32[1]{0}', space=sflag, size = 0x4, scoped, tag = 'scoped memory for tile.13']
  %s0 = inlined_call_operand.vmem [shape: f32[40], index: 0, kind: input, shape index: {}]
  %s1 = inlined_call_operand.vmem [shape: f32[4,40], index: 1, kind: output, shape index: {}]
  // Predicated region
  $region2: #{tile.13} parent=0 // pred_check
    _
  $region3: #{tile.13} parent=0 // pred_check_branch
    %3 = sbr.rel (0) target = $region5
  $region4: #{tile.13} parent=0 // pred_region
    _
  $region5: #{tile.13} parent=0 // pred_fallthru
    _
  %v4 = vld [vmem:[%s0] ss:$0 sm:$0xff]
  %5 = vst [vmem:[%s1] sm:$0xf] %v4

// kernel: tile.14
$region0: #{tile.14}
  %s0 = inlined_call_operand.vmem [shape: f32[4,40], index: 0, kind: input, shape index: {}]
  %s1 = inlined_call_operand.vmem [shape: f32[1,160], index: 1, kind: output, shape index: {}]
  $region1: #{tile.14} parent=0
    #allocation0 [shape = 'u8[8192]{0}', space=vmem, size = 0x2000, scoped, tag = 'scoped mem for output reshape']
    #allocation1 [shape = 'u8[4096]{0}', space=vmem, size = 0x1000, scoped, tag = 'scoped mem for input reshape']
    %s3 = sshll.u32 1, 4
    %s4 = ssub.s32 %s3, 1
    %v5 = vld [vmem:[%s0] sm:%s4]
    %6 = vst [vmem:[#allocation1] sm:%s4] %v5
    %v7 = vld [vmem:[#allocation1] sm:$0x1]
    %vm8 = vcmask 326656
    %9 = vst.msk [vmem:[#allocation0] sm:$0x1] %vm8, %v7
    %s10 = scalar_lea.vmem [#allocation1], 3
    %v11 = vld [vmem:[%s10] sm:$0x1]
    %s12 = scalar_lea.vmem [#allocation1], 3
    %v13 = vld [vmem:[%s12] sm:$0x1]
    %vm14 = vcmask 64512
    %v15 = vsel %vm14, %v13, %v11
    %16 = vrot.lane.b32.xlu0 %v15, 120
    %v17 = vpop.permute.xlu0 %16
    %vm18 = vcmask 261120
    %s19 = scalar_lea.vmem [#allocation0], 8
    %20 = vst.msk [vmem:[%s19] sm:$0x1] %vm18, %v17
    %vm21 = vcmask 1048512
    %22 = vst.msk [vmem:[#allocation0] sm:$0x1] %vm21, %v17
    %s23 = scalar_lea.vmem [#allocation1], 2
    %v24 = vld [vmem:[%s23] sm:$0x1]
    %25 = vrot.lane.b32.xlu0 %v24, 80
    %v26 = vpop.permute.xlu0 %25
    %vm27 = vcmask 982656
    %28 = vst.msk [vmem:[#allocation0] sm:$0x1] %vm27, %v26
    %s29 = scalar_lea.vmem [#allocation1], 1
    %v30 = vld [vmem:[%s29] sm:$0x1]
    %31 = vrot.lane.b32.xlu0 %v30, 40
    %v32 = vpop.permute.xlu0 %31
    %vm33 = vcmask 654656
    %34 = vst.msk [vmem:[#allocation0] sm:$0x1] %vm33, %v32
    %s36 = sshll.u32 1, 1
    %s37 = ssub.s32 %s36, 1
    %v39 = vld [vmem:[#allocation0] sm:%s37]
    %s40 = sshll.u32 1, 1
    %s41 = ssub.s32 %s40, 1
    %42 = vst [vmem:[%s1] sm:%s41] %v39
    %s43 = scalar_lea.vmem [#allocation0], 8
    %v44 = vld [vmem:[%s43] sm:%s37]
    %s45 = sshll.u32 1, 1
    %s46 = ssub.s32 %s45, 1
    %s47 = scalar_lea.vmem %s1, 1
    %48 = vst [vmem:[%s47] sm:%s46] %v44

// kernel: tile.18
$region0: #{tile.18}
  #allocation0 [shape = 's32[1]{0}', space=sflag, size = 0x4, scoped, tag = 'scoped memory for tile.18']
  %s0 = inlined_call_operand.vmem [shape: f32[2], index: 0, kind: input, shape index: {}]
  %s1 = inlined_call_operand.vmem [shape: f32[2,2], index: 1, kind: output, shape index: {}]
  // Predicated region
  $region2: #{tile.18} parent=0 // pred_check
    _
  $region3: #{tile.18} parent=0 // pred_check_branch
    %3 = sbr.rel (0) target = $region5
  $region4: #{tile.18} parent=0 // pred_region
    _
  $region5: #{tile.18} parent=0 // pred_fallthru
    _
  %v4 = vld [vmem:[%s0] ss:$0 sm:$0xff]
  %5 = vst [vmem:[%s1] sm:$0x3] %v4

// kernel: tile.19
$region0: #{tile.19}
  %s0 = inlined_call_operand.vmem [shape: f32[2,2], index: 0, kind: input, shape index: {}]
  %s1 = inlined_call_operand.vmem [shape: f32[1,4], index: 1, kind: output, shape index: {}]
  $region1: #{tile.19} parent=0
    #allocation0 [shape = 'u8[4096]{0}', space=vmem, size = 0x1000, scoped, tag = 'scoped mem for output reshape']
    #allocation1 [shape = 'u8[4096]{0}', space=vmem, size = 0x1000, scoped, tag = 'scoped mem for input reshape']
    %s3 = sshll.u32 1, 2
    %s4 = ssub.s32 %s3, 1
    %v5 = vld [vmem:[%s0] sm:%s4]
    %6 = vst [vmem:[#allocation1] sm:%s4] %v5
    %v7 = vld [vmem:[#allocation1] sm:$0x1]
    %vm8 = vcmask 15360
    %9 = vst.msk [vmem:[#allocation0] sm:$0x1] %vm8, %v7
    %s10 = scalar_lea.vmem [#allocation1], 1
    %v11 = vld [vmem:[%s10] sm:$0x1]
    %12 = vrot.lane.b32.xlu0 %v11, 2
    %v13 = vpop.permute.xlu0 %12
    %vm14 = vcmask 31760
    %15 = vst.msk [vmem:[#allocation0] sm:$0x1] %vm14, %v13
    %s17 = sshll.u32 1, 1
    %s18 = ssub.s32 %s17, 1
    %v20 = vld [vmem:[#allocation0] sm:%s18]
    %s21 = sshll.u32 1, 1
    %s22 = ssub.s32 %s21, 1
    %23 = vst [vmem:[%s1] sm:%s22] %v20

// kernel: rank_model_forward.1
$region0: #{rank_model_forward.1}
  #allocation0 [shape = 'u32[]', space=smem, size = 0x4, offset = 0x4, fixed_abs, tag = 'smem constant byte address 0x4 - core index']
  #allocation1 [shape = 'u32[144,128]{1,0:T(1,128)}', space=vmem, size = 0x12000, scoped, tag = 'internal scratch']
  %s0 = inlined_call_operand.vmem [shape: f32[4,128], index: 0, kind: input, shape index: {}]
  %s1 = inlined_call_operand.vmem [shape: f32[128,160], index: 1, kind: input, shape index: {}]
  %s2 = inlined_call_operand.vmem [shape: f32[1,160], index: 2, kind: input, shape index: {}]
  %s3 = inlined_call_operand.vmem [shape: f32[160,4], index: 3, kind: input, shape index: {}]
  %s4 = inlined_call_operand.vmem [shape: f32[1,4], index: 4, kind: input, shape index: {}]
  %s5 = inlined_call_operand.vmem [shape: f32[4,4], index: 5, kind: output, shape index: {}]
  %s6 = sld [smem:[#allocation0]]
  $region30: #{rank_model_forward.1} parent=0
    _
  %s8 = ssub.s32 1, %s6
  %s9 = scalar_select 0, %s8, %s6
  // Predicated region
  $region2: #{rank_model_forward.1} parent=0 // pred_check
    _
  $region3: #{rank_model_forward.1} parent=0 // pred_check_branch
    %11 = sbr.rel (0) target = $region5
  $region4: #{rank_model_forward.1} parent=0 // pred_region
    _
  $region5: #{rank_model_forward.1} parent=0 // pred_fallthru
    _
  // Predicated region
  $region6: #{rank_model_forward.1} parent=0 // pred_check
    _
  $region7: #{rank_model_forward.1} parent=0 // pred_check_branch
    %13 = sbr.rel (0) target = $region9
  $region8: #{rank_model_forward.1} parent=0 // pred_region
    _
  $region9: #{rank_model_forward.1} parent=0 // pred_fallthru
    _
  // Predicated region
  $region10: #{rank_model_forward.1} parent=0 // pred_check
    _
  $region11: #{rank_model_forward.1} parent=0 // pred_check_branch
    %15 = sbr.rel (0) target = $region13
  $region12: #{rank_model_forward.1} parent=0 // pred_region
    _
  $region13: #{rank_model_forward.1} parent=0 // pred_fallthru
    _
  // Predicated region
  $region14: #{rank_model_forward.1} parent=0 // pred_check
    _
  $region15: #{rank_model_forward.1} parent=0 // pred_check_branch
    %17 = sbr.rel (0) target = $region17
  $region16: #{rank_model_forward.1} parent=0 // pred_region
    _
  $region17: #{rank_model_forward.1} parent=0 // pred_fallthru
    _
  // Predicated region
  $region18: #{rank_model_forward.1} parent=0 // pred_check
    _
  $region19: #{rank_model_forward.1} parent=0 // pred_check_branch
    %19 = sbr.rel (0) target = $region21
  $region20: #{rank_model_forward.1} parent=0 // pred_region
    _
  $region21: #{rank_model_forward.1} parent=0 // pred_fallthru
    _
  %v20 = vld [vmem:[%s0] sm:$0xf]
  %v21 = vld [vmem:[%s1] sm:$0xff]
  %v22 = vld [vmem:[%s1 + $0x8] sm:$0xff]
  %v23 = vld [vmem:[%s1 + $0x10] sm:$0xff]
  %v24 = vld [vmem:[%s1 + $0x18] sm:$0xff]
  %v25 = vld [vmem:[%s1 + $0x20] sm:$0xff]
  %v26 = vld [vmem:[%s1 + $0x28] sm:$0xff]
  %v27 = vld [vmem:[%s1 + $0x30] sm:$0xff]
  %v28 = vld [vmem:[%s1 + $0x38] sm:$0xff]
  %v29 = vld [vmem:[%s1 + $0x40] sm:$0xff]
  %v30 = vld [vmem:[%s1 + $0x48] sm:$0xff]
  %v31 = vld [vmem:[%s1 + $0x50] sm:$0xff]
  %v32 = vld [vmem:[%s1 + $0x58] sm:$0xff]
  %v33 = vld [vmem:[%s1 + $0x60] sm:$0xff]
  %v34 = vld [vmem:[%s1 + $0x68] sm:$0xff]
  %v35 = vld [vmem:[%s1 + $0x70] sm:$0xff]
  %v36 = vld [vmem:[%s1 + $0x78] sm:$0xff]
  %v37 = vld [vmem:[%s1 + $0x80] sm:$0xff]
  %v38 = vld [vmem:[%s1 + $0x88] sm:$0xff]
  %v39 = vld [vmem:[%s1 + $0x90] sm:$0xff]
  %v40 = vld [vmem:[%s1 + $0x98] sm:$0xff]
  %v41 = vld [vmem:[%s1 + $0xa0] sm:$0xff]
  %v42 = vld [vmem:[%s1 + $0xa8] sm:$0xff]
  %v43 = vld [vmem:[%s1 + $0xb0] sm:$0xff]
  %v44 = vld [vmem:[%s1 + $0xb8] sm:$0xff]
  %v45 = vld [vmem:[%s1 + $0xc0] sm:$0xff]
  %v46 = vld [vmem:[%s1 + $0xc8] sm:$0xff]
  %v47 = vld [vmem:[%s1 + $0xd0] sm:$0xff]
  %v48 = vld [vmem:[%s1 + $0xd8] sm:$0xff]
  %v49 = vld [vmem:[%s1 + $0xe0] sm:$0xff]
  %v50 = vld [vmem:[%s1 + $0xe8] sm:$0xff]
  %v51 = vld [vmem:[%s1 + $0xf0] sm:$0xff]
  %v52 = vld [vmem:[%s1 + $0xf8] sm:$0xff]
  %v53 = vld [vmem:[%s2] sm:$0x3]
  %v55 = vlaneseq
  %v56 = vshrl.u32 %v55, 7
  %v57 = vsub.s32 0, %v56
  %v58 = vrot.slane %v53, %v57
  %v59 = vlaneseq
  %v60 = vshrl.u32 %v59, 7
  %v61 = vsub.s32 1, %v60
  %v62 = vrot.slane %v53, %v61
  %65 = vmatprep.subr.mxu0 %v52
  %66 = vmatpush1.msra.mxu0 %v51
  %67 = vmatprep.subr.mxu0 %v50
  %68 = vmatpush1.msra.mxu0 %v49
  %69 = vmatprep.subr.mxu0 %v48
  %70 = vmatpush1.msra.mxu0 %v47
  %71 = vmatprep.subr.mxu0 %v46
  %72 = vmatpush1.msra.mxu0 %v45
  %73 = vmatprep.subr.mxu0 %v44
  %74 = vmatpush1.msra.mxu0 %v43
  %75 = vmatprep.subr.mxu0 %v42
  %76 = vmatpush1.msra.mxu0 %v41
  %77 = vmatprep.subr.mxu0 %v40
  %78 = vmatpush1.msra.mxu0 %v39
  %79 = vmatprep.subr.mxu0 %v38
  %80 = vmatpush1.msra.mxu0 %v37
  %81 = vmatprep.subr.mxu0 %v36
  %82 = vmatpush1.msra.mxu0 %v35
  %83 = vmatprep.subr.mxu0 %v34
  %84 = vmatpush1.msra.mxu0 %v33
  %85 = vmatprep.subr.mxu0 %v32
  %86 = vmatpush1.msra.mxu0 %v31
  %87 = vmatprep.subr.mxu0 %v30
  %88 = vmatpush1.msra.mxu0 %v29
  %89 = vmatprep.subr.mxu0 %v28
  %90 = vmatpush1.msra.mxu0 %v27
  %91 = vmatprep.subr.mxu0 %v26
  %92 = vmatpush1.msra.mxu0 %v25
  %93 = vmatprep.subr.mxu0 %v24
  %94 = vmatpush1.msra.mxu0 %v23
  %95 = vmatprep.subr.mxu0 %v22
  %96 = vmatpush1.msra.mxu0 %v21
  %97 = vmatprep.subr.mxu0 0.0
  %98 = vmatpush2.msra.mxu0 0.0
  %99 = vmatprep.subr.mxu0 0.0
  %100 = vmatpush2.msra.mxu0 0.0
  %101 = vmatprep.subr.mxu0 0.0
  %102 = vmatpush2.msra.mxu0 0.0
  %103 = vmatprep.subr.mxu0 0.0
  %104 = vmatpush2.msra.mxu0 0.0
  %105 = vmatprep.subr.mxu0 0.0
  %106 = vmatpush2.msra.mxu0 0.0
  %107 = vmatprep.subr.mxu0 0.0
  %108 = vmatpush2.msra.mxu0 0.0
  %109 = vmatprep.subr.mxu0 0.0
  %110 = vmatpush2.msra.mxu0 0.0
  %111 = vmatprep.subr.mxu0 0.0
  %112 = vmatpush2.msra.mxu0 0.0
  %113 = vmatprep.subr.mxu0 0.0
  %114 = vmatpush2.msra.mxu0 0.0
  %115 = vmatprep.subr.mxu0 0.0
  %116 = vmatpush2.msra.mxu0 0.0
  %117 = vmatprep.subr.mxu0 0.0
  %118 = vmatpush2.msra.mxu0 0.0
  %119 = vmatprep.subr.mxu0 0.0
  %120 = vmatpush2.msra.mxu0 0.0
  %121 = vmatprep.subr.mxu0 0.0
  %122 = vmatpush2.msra.mxu0 0.0
  %123 = vmatprep.subr.mxu0 0.0
  %124 = vmatpush2.msra.mxu0 0.0
  %125 = vmatprep.subr.mxu0 0.0
  %126 = vmatpush2.msra.mxu0 0.0
  %127 = vmatprep.subr.mxu0 0.0
  %128 = vmatpush2.msra.mxu0 0.0
  %129 = vmatprep.mubr.f32.mxu0 0.0
  %130 = vmatmul.mubr.f32.gmra.mxu0 %v20
  %v131 = vpop.f32.mrf.mxu0
  %v132 = vadd.f32 %v58, %v131
  %v133 = vpop.f32.mrf.mxu0
  %v134 = vadd.f32 %v62, %v133
  %135 = vdwg.mxu0
  %v136 = vmax.f32 %v132, 0.0
  %v137 = vmax.f32 %v134, 0.0
  %v138 = vld [vmem:[%s3] sm:$0xff]
  %v139 = vld [vmem:[%s3 + $0x8] sm:$0xff]
  %v140 = vld [vmem:[%s3 + $0x10] sm:$0xff]
  %v141 = vld [vmem:[%s3 + $0x18] sm:$0xff]
  %v142 = vld [vmem:[%s3 + $0x20] sm:$0xff]
  %v143 = vld [vmem:[%s3 + $0x28] sm:$0xff]
  %v144 = vld [vmem:[%s3 + $0x30] sm:$0xff]
  %v145 = vld [vmem:[%s3 + $0x38] sm:$0xff]
  %v146 = vld [vmem:[%s3 + $0x40] sm:$0xff]
  %v147 = vld [vmem:[%s3 + $0x48] sm:$0xff]
  %v148 = vld [vmem:[%s3 + $0x50] sm:$0xff]
  %v149 = vld [vmem:[%s3 + $0x58] sm:$0xff]
  %v150 = vld [vmem:[%s3 + $0x60] sm:$0xff]
  %v151 = vld [vmem:[%s3 + $0x68] sm:$0xff]
  %v152 = vld [vmem:[%s3 + $0x70] sm:$0xff]
  %v153 = vld [vmem:[%s3 + $0x78] sm:$0xff]
  %v154 = vld [vmem:[%s3 + $0x80] sm:$0xff]
  %v155 = vld [vmem:[%s3 + $0x88] sm:$0xff]
  %v156 = vld [vmem:[%s3 + $0x90] sm:$0xff]
  %v157 = vld [vmem:[%s3 + $0x98] sm:$0xff]
  %v158 = vld [vmem:[%s4] sm:$0x1]
  %v160 = vlaneseq
  %v161 = vshrl.u32 %v160, 7
  %v162 = vsub.s32 0, %v161
  %v163 = vrot.slane %v158, %v162
  %vm165 = vcmask 261120
  %v167 = vsel %vm165, %v137, 0
  %169 = vmatprep.subr.mxu0 0.0
  %170 = vmatpush1.msra.mxu0 %v153
  %171 = vmatprep.subr.mxu0 0.0
  %172 = vmatpush1.msra.mxu0 %v152
  %173 = vmatprep.subr.mxu0 0.0
  %174 = vmatpush1.msra.mxu0 %v151
  %175 = vmatprep.subr.mxu0 0.0
  %176 = vmatpush1.msra.mxu0 %v150
  %177 = vmatprep.subr.mxu0 0.0
  %178 = vmatpush1.msra.mxu0 %v149
  %179 = vmatprep.subr.mxu0 0.0
  %180 = vmatpush1.msra.mxu0 %v148
  %181 = vmatprep.subr.mxu0 0.0
  %182 = vmatpush1.msra.mxu0 %v147
  %183 = vmatprep.subr.mxu0 0.0
  %184 = vmatpush1.msra.mxu0 %v146
  %185 = vmatprep.subr.mxu0 0.0
  %186 = vmatpush1.msra.mxu0 %v145
  %187 = vmatprep.subr.mxu0 0.0
  %188 = vmatpush1.msra.mxu0 %v144
  %189 = vmatprep.subr.mxu0 0.0
  %190 = vmatpush1.msra.mxu0 %v143
  %191 = vmatprep.subr.mxu0 0.0
  %192 = vmatpush1.msra.mxu0 %v142
  %193 = vmatprep.subr.mxu0 0.0
  %194 = vmatpush1.msra.mxu0 %v141
  %195 = vmatprep.subr.mxu0 0.0
  %196 = vmatpush1.msra.mxu0 %v140
  %197 = vmatprep.subr.mxu0 0.0
  %198 = vmatpush1.msra.mxu0 %v139
  %199 = vmatprep.subr.mxu0 0.0
  %200 = vmatpush1.msra.mxu0 %v138
  %201 = vmatprep.subr.mxu0 0.0
  %202 = vmatpush2.msra.mxu0 0.0
  %203 = vmatprep.subr.mxu0 0.0
  %204 = vmatpush2.msra.mxu0 0.0
  %205 = vmatprep.subr.mxu0 0.0
  %206 = vmatpush2.msra.mxu0 0.0
  %207 = vmatprep.subr.mxu0 0.0
  %208 = vmatpush2.msra.mxu0 0.0
  %209 = vmatprep.subr.mxu0 0.0
  %210 = vmatpush2.msra.mxu0 0.0
  %211 = vmatprep.subr.mxu0 0.0
  %212 = vmatpush2.msra.mxu0 0.0
  %213 = vmatprep.subr.mxu0 0.0
  %214 = vmatpush2.msra.mxu0 0.0
  %215 = vmatprep.subr.mxu0 0.0
  %216 = vmatpush2.msra.mxu0 0.0
  %217 = vmatprep.subr.mxu0 0.0
  %218 = vmatpush2.msra.mxu0 0.0
  %219 = vmatprep.subr.mxu0 0.0
  %220 = vmatpush2.msra.mxu0 0.0
  %221 = vmatprep.subr.mxu0 0.0
  %222 = vmatpush2.msra.mxu0 0.0
  %223 = vmatprep.subr.mxu0 0.0
  %224 = vmatpush2.msra.mxu0 0.0
  %225 = vmatprep.subr.mxu0 0.0
  %226 = vmatpush2.msra.mxu0 %v157
  %227 = vmatprep.subr.mxu0 0.0
  %228 = vmatpush2.msra.mxu0 %v156
  %229 = vmatprep.subr.mxu0 0.0
  %230 = vmatpush2.msra.mxu0 %v155
  %231 = vmatprep.subr.mxu0 0.0
  %232 = vmatpush2.msra.mxu0 %v154
  %233 = vmatprep.mubr.f32.mxu0 %v167
  %234 = vmatmul.mubr.f32.gmra.mxu0 %v136
  %v235 = vpop.f32.mrf.mxu0
  %v236 = vadd.f32 %v163, %v235
  %v237 = vpop.f32.mrf.mxu0
  %238 = vdwg.mxu0
  %v239 = vxor.u32 %v236, 2147483648
  %v240 = vmul.f32 %v239, 1.442695
  %v241 = vpow.pop %v240
  %v242 = vadd.f32 %v241, 1.0
  %v243 = vrcp.pop %v242
  %v244 = vmul.f32 1.0, %v243
  %vm245 = vcmask 27648
  %246 = vst.msk [vmem:[%s5] sm:$0xf] %vm245, %v244
  // Predicated region
  $region22: #{rank_model_forward.1} parent=0 // pred_check
    _
  $region23: #{rank_model_forward.1} parent=0 // pred_check_branch
    %248 = sbr.rel (0) target = $region25
  $region24: #{rank_model_forward.1} parent=0 // pred_region
    _
  $region25: #{rank_model_forward.1} parent=0 // pred_fallthru
    _
  // Predicated region
  $region26: #{rank_model_forward.1} parent=0 // pred_check
    _
  $region27: #{rank_model_forward.1} parent=0 // pred_check_branch
    %250 = sbr.rel (0) target = $region29
  $region28: #{rank_model_forward.1} parent=0 // pred_region
    _
  $region29: #{rank_model_forward.1} parent=0 // pred_fallthru
    _

</llo_original>
